<compile_context>
chip_gen: v5e
topology: v5e:2x2
jax: 0.10.0
libtpu: 0.0.40
codegen_flags: <defaults>
</compile_context>

<pallas_src>
import math

import jax
import jax.numpy as jnp
from jax import lax
from jax.experimental import pallas as pl
from jax.experimental.pallas import tpu as pltpu


def _layer_dims(n_factors, n_layers):
    """[(in_i, out_i)] for the hidden MLP layers (PyTorch loop i=1..n_layers-1)."""
    dims = []
    for i in range(1, n_layers):
        in_size = n_factors * 2 ** (n_layers - i)
        dims.append((in_size, in_size // 2))
    return tuple(dims)


def _slab_layout(n_users, n_items, n_factors, n_layers):
    """Column/row layout of the single packed parameter slab."""
    layer_dims = _layer_dims(n_factors, n_layers)
    L = len(layer_dims)
    emb_dim = n_factors * 2 ** (n_layers - 2)
    n_total = n_users + n_items

    w_offs = []
    col = n_total                        # merged gather matrix occupies [0, n_total)
    for li in range(1, L):
        in_i, _ = layer_dims[li]
        w_offs.append(col)               # transposed hidden weight W_li^T
        col += in_i
    b_off = col                          # L bias columns
    p_off = b_off + L                    # pred-weight column
    pb_off = p_off + 1                   # pred-bias column
    n_cols = pb_off + 1
    n_rows = max(max(o for _, o in layer_dims), n_factors, 8)

    return dict(layer_dims=layer_dims, L=L, emb_dim=emb_dim, n_total=n_total,
                w_offs=tuple(w_offs), b_off=b_off, p_off=p_off, pb_off=pb_off,
                n_rows=n_rows, n_cols=n_cols)


def _make_kernel(*, b_tile, n_users, n_factors, lay):
    layer_dims = lay["layer_dims"]
    L = lay["L"]
    n_total = lay["n_total"]
    w_offs = lay["w_offs"]
    b_off, p_off, pb_off = lay["b_off"], lay["p_off"], lay["pb_off"]
    out0 = layer_dims[0][1]
    f32 = jnp.float32

    def kernel(ids_ref, slab_ref, out_ref):
        # ids_ref: (2, Bt) int32, slab_ref: (R, C) f32, out_ref: (1, Bt) f32.
        users = ids_ref[0:1, :]                      # (1, Bt)
        items = ids_ref[1:2, :] + n_users            # offset into stacked table

        # Stacked one-hot over [user rows ; item rows]: (n_total, Bt).
        # NOTE: out-of-range / negative ids silently yield a zero one-hot
        # (zero embedding) instead of erroring like nn.Embedding.
        rows = lax.broadcasted_iota(jnp.int32, (n_total, b_tile), 0)
        onehot = ((rows == users) | (rows == items)).astype(f32)

        # Stage 1: embedding gather + concat + layer-0 linear folded into ONE
        # MXU matmul against the precomputed merged matrix M, then bias + ReLU.
        m = slab_ref[0:out0, 0:n_total]                                  # (out0, n_total)
        h = (jnp.dot(m, onehot, preferred_element_type=f32)
             + slab_ref[0:out0, b_off:b_off + 1])                        # (out0, Bt)
        h = jnp.maximum(h, 0.0)

        # Remaining hidden layers: h <- relu(W_li^T @ h + b_li).
        for li in range(1, L):
            in_i, out_i = layer_dims[li]
            off = w_offs[li - 1]
            w = slab_ref[0:out_i, off:off + in_i]                        # (out_i, in_i)
            b = slab_ref[0:out_i, b_off + li:b_off + li + 1]             # (out_i, 1)
            h = jnp.maximum(jnp.dot(w, h, preferred_element_type=f32) + b, 0.0)

        # Prediction head (n_factors -> 1): VPU multiply + XLU sublane reduce
        # (cheaper than a 1-column MXU matmul).
        wp = slab_ref[0:n_factors, p_off:p_off + 1]                      # (nf, 1)
        bp = slab_ref[0:1, pb_off:pb_off + 1]                            # (1, 1)
        logits = jnp.sum(h * wp, axis=0, keepdims=True) + bp             # (1, Bt)

        # sigmoid(z) = 1 / (1 + exp(-z)); exact reciprocal (EUP otherwise idle).
        out_ref[...] = pl.reciprocal(1.0 + jnp.exp(-logits))

    return kernel


def build_pallas_forward(*, n_users, n_items, n_factors, n_layers, batch, b_tile=128):
    lay = _slab_layout(n_users, n_items, n_factors, n_layers)
    b_pad = int(pl.cdiv(batch, b_tile)) * b_tile         # lane-dense batch padding

    kernel = _make_kernel(b_tile=b_tile, n_users=n_users,
                          n_factors=n_factors, lay=lay)

    call = pl.pallas_call(
        kernel,
        out_shape=jax.ShapeDtypeStruct((1, b_pad), jnp.float32),
        grid_spec=pltpu.PrefetchScalarGridSpec(
            num_scalar_prefetch=0,
            grid=(b_pad // b_tile,),                      # 1-D grid over batch tiles
            in_specs=[
                pl.BlockSpec((2, b_tile), lambda b: (0, b)),                    # ids
                pl.BlockSpec((lay["n_rows"], lay["n_cols"]), lambda b: (0, 0)),  # slab
            ],
            out_specs=pl.BlockSpec((1, b_tile), lambda b: (0, b)),
        ),
        compiler_params=pltpu.CompilerParams(
            dimension_semantics=("parallel",),            # megacore-shardable on v7x
            vmem_limit_bytes=32 * 1024 * 1024,            # explicit (v5e default is 16 MiB)
        ),
    )

    @jax.jit
    def forward(ids, slab):
        # ids: pre-stacked (2, batch) int32 (row 0 = users, row 1 = items).
        ids = jnp.pad(ids.astype(jnp.int32), ((0, 0), (0, b_pad - batch)))
        out = call(ids, slab)                             # (1, b_pad), lane-dense
        return out[0, :batch]                             # == .view(-1)

    return forward


def pack_params(params, *, n_users, n_items, n_factors, n_layers):
    """One-time packing (outside the hot path) of PyTorch-layout parameters
    into the single dense slab the kernel consumes."""
    lay = _slab_layout(n_users, n_items, n_factors, n_layers)
    E = lay["emb_dim"]
    layer_dims = lay["layer_dims"]
    out0 = layer_dims[0][1]
    hp = jax.lax.Precision.HIGHEST

    # Merged gather-matrix: M_u = W0^T[:, :E] @ user_emb^T, M_i = W0^T[:, E:] @ item_emb^T.
    w0 = params["hidden_w"][0]                              # (2E, out0)
    m_u = jnp.dot(w0[:E].T, params["user_emb"].T, precision=hp)   # (out0, n_users)
    m_i = jnp.dot(w0[E:].T, params["item_emb"].T, precision=hp)   # (out0, n_items)

    slab = jnp.zeros((lay["n_rows"], lay["n_cols"]), jnp.float32)
    slab = slab.at[:out0, :n_users].set(m_u)
    slab = slab.at[:out0, n_users:n_users + n_items].set(m_i)

    for k, li in enumerate(range(1, lay["L"])):
        in_i, out_i = layer_dims[li]
        off = lay["w_offs"][k]
        slab = slab.at[:out_i, off:off + in_i].set(params["hidden_w"][li].T)

    for li, (_, out_i) in enumerate(layer_dims):
        slab = slab.at[:out_i, lay["b_off"] + li].set(params["hidden_b"][li].reshape(-1))

    slab = slab.at[:n_factors, lay["p_off"]].set(params["w_pred"].reshape(-1))
    slab = slab.at[0, lay["pb_off"]].set(params["b_pred"].reshape(-1)[0])
    return slab


def init_params(key, n_users, n_items, n_factors, n_layers):
    """Deterministic synthetic parameters mirroring the PyTorch __init__
    (fusion=False, use_pretrain=False)."""
    emb_dim = n_factors * 2 ** (n_layers - 2)
    keys = jax.random.split(key, 4 + 4 * n_layers)
    ki = iter(range(len(keys)))

    params = {}
    # nn.Embedding default init: N(0, 1)
    params["user_emb"] = jax.random.normal(keys[next(ki)], (n_users, emb_dim), jnp.float32)
    params["item_emb"] = jax.random.normal(keys[next(ki)], (n_items, emb_dim), jnp.float32)

    hidden_w, hidden_b = [], []
    for i in range(1, n_layers):
        in_size = n_factors * 2 ** (n_layers - i)
        out_size = in_size // 2
        bound = 1.0 / math.sqrt(in_size)  # nn.Linear default init
        w = jax.random.uniform(keys[next(ki)], (in_size, out_size), jnp.float32,
                               minval=-bound, maxval=bound)
        b = jax.random.uniform(keys[next(ki)], (1, out_size), jnp.float32,
                               minval=-bound, maxval=bound)
        hidden_w.append(w)
        hidden_b.append(b)
    params["hidden_w"] = hidden_w
    params["hidden_b"] = hidden_b

    # pred_layer: weight ~ N(0, 0.01) (fusion=False branch), bias default uniform
    bound = 1.0 / math.sqrt(n_factors)
    params["w_pred"] = 0.01 * jax.random.normal(keys[next(ki)], (n_factors, 1), jnp.float32)
    params["b_pred"] = jax.random.uniform(keys[next(ki)], (1, 1), jnp.float32,
                                          minval=-bound, maxval=bound)
    return params


def mlp_forward_ref(users, items, user_emb, item_emb, hidden_w, hidden_b, w_pred, b_pred):
    hp = jax.lax.Precision.HIGHEST
    u = user_emb[users]
    it = item_emb[items]
    h = jnp.concatenate([u, it], axis=-1)
    for w, b in zip(hidden_w, hidden_b):
        h = jnp.maximum(jnp.dot(h, w, precision=hp) + b, 0.0)
    return jax.nn.sigmoid(jnp.dot(h, w_pred, precision=hp) + b_pred).reshape(-1)


if __name__ == "__main__":
    n_users, n_items = 32, 32
    n_factors, n_layers = 8, 3
    batch = 8

    key = jax.random.PRNGKey(0)
    pkey, ukey, ikey = jax.random.split(key, 3)
    params = init_params(pkey, n_users, n_items, n_factors, n_layers)

    users = jax.random.randint(ukey, (batch,), 0, n_users, dtype=jnp.int32)
    items = jax.random.randint(ikey, (batch,), 0, n_items, dtype=jnp.int32)

    slab = pack_params(params, n_users=n_users, n_items=n_items,
                       n_factors=n_factors, n_layers=n_layers)
    forward = build_pallas_forward(n_users=n_users, n_items=n_items,
                                   n_factors=n_factors, n_layers=n_layers,
                                   batch=batch)

    ids = jnp.stack([users, items], axis=0)   # pre-stacked (2, B) ids, built once
    out = jax.block_until_ready(forward(ids, slab))

    ref = mlp_forward_ref(users, items,
                          params["user_emb"], params["item_emb"],
                          params["hidden_w"], params["hidden_b"],
                          params["w_pred"], params["b_pred"])

    assert out.shape == (batch,)
    # Exact-reciprocal sigmoid -> tighter tolerance than the previous approx version.
    assert jnp.allclose(out, ref, rtol=1e-3, atol=1e-3), (out, ref)
    print("KERNEL_OK")
</pallas_src>

<mosaic_0001>
module attributes {stable_mosaic.version = 11 : i64} {
  func.func @kernel(%arg0: i32, %arg1: memref<2x128xi32, #tpu.memory_space<vmem>>, %arg2: memref<16x84xf32, #tpu.memory_space<vmem>>, %arg3: memref<1x128xf32, #tpu.memory_space<vmem>>) attributes {dimension_semantics = [#tpu.dimension_semantics<parallel>], iteration_bounds = array<i64: 1>, scalar_prefetch = 0 : i64, scratch_operands = 0 : i64, tpu.core_type = #tpu.core_type<tc>, window_params = [{transform_indices = @transform_0, window_bounds = array<i64: 2, 128>}, {pipeline_mode = #tpu.pipeline_mode<synchronous>, transform_indices = @transform_1, window_bounds = array<i64: 16, 84>}, {transform_indices = @transform_2, window_bounds = array<i64: 1, 128>}]} {
    %c0 = arith.constant 0 : index
    %c0_0 = arith.constant 0 : index
    %0 = vector.load %arg1[%c0, %c0_0] : memref<2x128xi32, #tpu.memory_space<vmem>>, vector<1x128xi32>
    %c1 = arith.constant 1 : index
    %c0_1 = arith.constant 0 : index
    %1 = vector.load %arg1[%c1, %c0_1] : memref<2x128xi32, #tpu.memory_space<vmem>>, vector<1x128xi32>
    %c32_i32 = arith.constant 32 : i32
    %2 = vector.broadcast %c32_i32 : i32 to vector<1x128xi32>
    %3 = arith.addi %1, %2 : vector<1x128xi32>
    %4 = tpu.iota {dimensions = array<i32: 0>} : vector<64x128xi32>
    %5 = vector.broadcast %0 : vector<1x128xi32> to vector<64x128xi32>
    %6 = arith.cmpi eq, %4, %5 : vector<64x128xi32>
    %7 = vector.broadcast %3 : vector<1x128xi32> to vector<64x128xi32>
    %8 = arith.cmpi eq, %4, %7 : vector<64x128xi32>
    %9 = arith.ori %6, %8 : vector<64x128xi1>
    %10 = arith.extui %9 : vector<64x128xi1> to vector<64x128xi32>
    %11 = arith.sitofp %10 : vector<64x128xi32> to vector<64x128xf32>
    %c0_2 = arith.constant 0 : index
    %c0_3 = arith.constant 0 : index
    %12 = vector.load %arg2[%c0_2, %c0_3] : memref<16x84xf32, #tpu.memory_space<vmem>>, vector<16x64xf32>
    %cst = arith.constant dense<0.000000e+00> : vector<16x128xf32>
    %13 = tpu.matmul %12, %11, %cst {dimension_numbers = #tpu.dot_dimension_numbers<[1], [0], [0], [1], [0, 0, 1, 1], [], []>} : vector<16x64xf32>, vector<64x128xf32>, vector<16x128xf32> -> vector<16x128xf32>
    %c0_4 = arith.constant 0 : index
    %c80 = arith.constant 80 : index
    %14 = vector.load %arg2[%c0_4, %c80] : memref<16x84xf32, #tpu.memory_space<vmem>>, vector<16x1xf32>
    %15 = vector.broadcast %14 : vector<16x1xf32> to vector<16x128xf32>
    %16 = arith.addf %13, %15 : vector<16x128xf32>
    %cst_5 = arith.constant 0.000000e+00 : f32
    %17 = vector.broadcast %cst_5 : f32 to vector<16x128xf32>
    %18 = arith.maximumf %16, %17 : vector<16x128xf32>
    %c0_6 = arith.constant 0 : index
    %c64 = arith.constant 64 : index
    %19 = vector.load %arg2[%c0_6, %c64] : memref<16x84xf32, #tpu.memory_space<vmem>>, vector<8x16xf32>
    %c0_7 = arith.constant 0 : index
    %c81 = arith.constant 81 : index
    %20 = vector.load %arg2[%c0_7, %c81] : memref<16x84xf32, #tpu.memory_space<vmem>>, vector<8x1xf32>
    %cst_8 = arith.constant dense<0.000000e+00> : vector<8x128xf32>
    %21 = tpu.matmul %19, %18, %cst_8 {dimension_numbers = #tpu.dot_dimension_numbers<[1], [0], [0], [1], [0, 0, 1, 1], [], []>} : vector<8x16xf32>, vector<16x128xf32>, vector<8x128xf32> -> vector<8x128xf32>
    %22 = vector.broadcast %20 : vector<8x1xf32> to vector<8x128xf32>
    %23 = arith.addf %21, %22 : vector<8x128xf32>
    %cst_9 = arith.constant 0.000000e+00 : f32
    %24 = vector.broadcast %cst_9 : f32 to vector<8x128xf32>
    %25 = arith.maximumf %23, %24 : vector<8x128xf32>
    %c0_10 = arith.constant 0 : index
    %c82 = arith.constant 82 : index
    %26 = vector.load %arg2[%c0_10, %c82] : memref<16x84xf32, #tpu.memory_space<vmem>>, vector<8x1xf32>
    %c0_11 = arith.constant 0 : index
    %c83 = arith.constant 83 : index
    %27 = vector.load %arg2[%c0_11, %c83] : memref<16x84xf32, #tpu.memory_space<vmem>>, vector<1x1xf32>
    %28 = vector.broadcast %26 : vector<8x1xf32> to vector<8x128xf32>
    %29 = arith.mulf %25, %28 : vector<8x128xf32>
    %cst_12 = arith.constant dense<0.000000e+00> : vector<128xf32>
    %30 = vector.multi_reduction <add>, %29, %cst_12 [0] : vector<8x128xf32> to vector<128xf32>
    %31 = vector.shape_cast %30 : vector<128xf32> to vector<1x128xf32>
    %32 = vector.broadcast %27 : vector<1x1xf32> to vector<1x128xf32>
    %33 = arith.addf %31, %32 : vector<1x128xf32>
    %cst_13 = arith.constant 0.000000e+00 : f32
    %34 = vector.broadcast %cst_13 : f32 to vector<1x128xf32>
    %35 = arith.subf %34, %33 : vector<1x128xf32>
    %36 = math.exp %35 : vector<1x128xf32>
    %cst_14 = arith.constant 1.000000e+00 : f32
    %37 = vector.broadcast %cst_14 : f32 to vector<1x128xf32>
    %38 = arith.addf %37, %36 : vector<1x128xf32>
    %39 = tpu.reciprocal %38 : vector<1x128xf32> -> vector<1x128xf32>
    %c0_15 = arith.constant 0 : index
    %c0_16 = arith.constant 0 : index
    %40 = vector.load %arg3[%c0_15, %c0_16] : memref<1x128xf32, #tpu.memory_space<vmem>>, vector<1x128xf32>
    tpu.vector_store %arg3[%c0_15, %c0_16], %39 {strides = array<i32>} : memref<1x128xf32, #tpu.memory_space<vmem>>, vector<1x128xf32>,
    return
  }
  func.func @transform_0(%arg0: i32) -> (i32, i32) {
    %c0_i32 = arith.constant 0 : i32
    %c0_i32_0 = arith.constant 0 : i32
    return %c0_i32, %arg0 : i32, i32
  }
  func.func @transform_1(%arg0: i32) -> (i32, i32) {
    %c0_i32 = arith.constant 0 : i32
    %c0_i32_0 = arith.constant 0 : i32
    %c0_i32_1 = arith.constant 0 : i32
    return %c0_i32, %c0_i32_0 : i32, i32
  }
  func.func @transform_2(%arg0: i32) -> (i32, i32) {
    %c0_i32 = arith.constant 0 : i32
    %c0_i32_0 = arith.constant 0 : i32
    return %c0_i32, %arg0 : i32, i32
  }
}

</mosaic_0001>

<llo_original>
// kernel: forward.1
$region0: #{forward.1}
  #allocation0 [shape = 'u32[]', space=smem, size = 0x4, offset = 0x4, fixed_abs, tag = 'smem constant byte address 0x4 - core index']
  #allocation1 [shape = 'u32[72,128]{1,0:T(1,128)}', space=vmem, size = 0x9000, scoped, tag = 'internal scratch']
  %s0 = inlined_call_operand.vmem [shape: s32[2,128], index: 0, kind: input, shape index: {}]
  %s1 = inlined_call_operand.hbm [shape: f32[16,84], index: 1, kind: input, shape index: {}]
  %s2 = inlined_call_operand.vmem [shape: f32[1,128], index: 2, kind: output, shape index: {}]
  %s3 = sld [smem:[#allocation0]]
  $region22: #{forward.1} parent=0
    _
  %s5 = ssub.s32 1, %s3
  %s6 = scalar_select 0, %s5, %s3
  $region1: #{forward.1} parent=0
    #allocation2 [shape = 'u8[8192]{0}', space=vmem, size = 0x2000, scoped, tag = 'input window, operand 1, single buffered']
    #allocation3 [shape = 's32[1]{0}', space=sflag, size = 0x4, scoped, tag = 'scoped memory for forward.1']
    %7 = vsyncpa [#allocation3], 0
    // Predicated region
    $region2: #{forward.1} parent=1 // pred_check
      _
    $region3: #{forward.1} parent=1 // pred_check_branch
      %9 = sbr.rel (0) target = $region5
    $region4: #{forward.1} parent=1 // pred_region
      _
    $region5: #{forward.1} parent=1 // pred_fallthru
      _
    // Predicated region
    $region6: #{forward.1} parent=1 // pred_check
      _
    $region7: #{forward.1} parent=1 // pred_check_branch
      %11 = sbr.rel (0) target = $region9
    $region8: #{forward.1} parent=1 // pred_region
      %13 = vsyncadd [#allocation3], 0
      %s14 = sshll.u32 %s1, 4
      %s15 = int_to_ptr.hbm [resolvable:$true] %s14
      %s16 = sshll.u32 [#allocation2], 4
      %s17 = int_to_ptr.vmem [resolvable:$true] %s16
      %22 = dma.hbm_to_vmem [thread:$0]  %s15, 256, %s17, [#allocation3], 128, 128, 8
    $region9: #{forward.1} parent=1 // pred_fallthru
      _
    // Predicated region
    $region10: #{forward.1} parent=1 // pred_check
      _
    $region11: #{forward.1} parent=1 // pred_check_branch
      %24 = sbr.rel (0) target = $region13
    $region12: #{forward.1} parent=1 // pred_region
      %26 = dma.done [#allocation3], 256
    $region13: #{forward.1} parent=1 // pred_fallthru
      _
    %v27 = vld [vmem:[%s0] sm:$0x1]
    %v28 = vld [vmem:[%s0 + $0x1] sm:$0x1]
    %v29 = vadd.s32 %v28, 32
    %v30 = vlaneseq
    %v31 = vshrl.u32 %v30, 7
    %v32 = vadd.s32 %v31, 8
    %v33 = vadd.s32 %v31, 16
    %v34 = vadd.s32 %v31, 24
    %v35 = vadd.s32 %v31, 32
    %v36 = vadd.s32 %v31, 40
    %v37 = vadd.s32 %v31, 48
    %v38 = vadd.s32 %v31, 56
    %v39 = vperm.slane %v27, 0
    %vm40 = vcmp.eq.s32.totalorder %v31, %v39
    %vm41 = vcmp.eq.s32.totalorder %v32, %v39
    %vm42 = vcmp.eq.s32.totalorder %v33, %v39
    %vm43 = vcmp.eq.s32.totalorder %v34, %v39
    %vm44 = vcmp.eq.s32.totalorder %v35, %v39
    %vm45 = vcmp.eq.s32.totalorder %v36, %v39
    %vm46 = vcmp.eq.s32.totalorder %v37, %v39
    %vm47 = vcmp.eq.s32.totalorder %v38, %v39
    %v48 = vperm.slane %v29, 0
    %vm49 = vcmp.eq.s32.totalorder %v31, %v48
    %vm50 = vcmp.eq.s32.totalorder %v32, %v48
    %vm51 = vcmp.eq.s32.totalorder %v33, %v48
    %vm52 = vcmp.eq.s32.totalorder %v34, %v48
    %vm53 = vcmp.eq.s32.totalorder %v35, %v48
    %vm54 = vcmp.eq.s32.totalorder %v36, %v48
    %vm55 = vcmp.eq.s32.totalorder %v37, %v48
    %vm56 = vcmp.eq.s32.totalorder %v38, %v48
    %vm57 = vmor %vm40, %vm49
    %vm58 = vmor %vm41, %vm50
    %vm59 = vmor %vm42, %vm51
    %vm60 = vmor %vm43, %vm52
    %vm61 = vmor %vm44, %vm53
    %vm62 = vmor %vm45, %vm54
    %vm63 = vmor %vm46, %vm55
    %vm64 = vmor %vm47, %vm56
    %v65 = vsel %vm57, 1, 0
    %v66 = vsel %vm58, 1, 0
    %v67 = vsel %vm59, 1, 0
    %v68 = vsel %vm60, 1, 0
    %v69 = vsel %vm61, 1, 0
    %v70 = vsel %vm62, 1, 0
    %v71 = vsel %vm63, 1, 0
    %v72 = vsel %vm64, 1, 0
    %v73 = vcvt.s32.f32 %v65
    %v74 = vcvt.s32.f32 %v66
    %v75 = vcvt.s32.f32 %v67
    %v76 = vcvt.s32.f32 %v68
    %v77 = vcvt.s32.f32 %v69
    %v78 = vcvt.s32.f32 %v70
    %v79 = vcvt.s32.f32 %v71
    %v80 = vcvt.s32.f32 %v72
    %v81 = vld [vmem:[#allocation2] sm:$0xff]
    %v82 = vld [vmem:[#allocation2 + $0x8] sm:$0xff]
    %84 = vset.pattern.permute.xlu0 80
    %85 = vperm.xlu0 %84, %v81
    %v86 = vpop.permute.xlu0 %85
    %89 = vset.pattern.permute.xlu0 80
    %90 = vperm.xlu0 %89, %v82
    %v91 = vpop.permute.xlu0 %90
    %vm93 = vcmask 523264
    %v94 = vsel %vm93, %v81, 0
    %v96 = vsel %vm93, %v82, 0
    %98 = vmatpush.msra.mxu0 0.0
    %99 = vmatpush.msra.mxu0 0.0
    %100 = vmatpush.msra.mxu0 0.0
    %101 = vmatpush.msra.mxu0 0.0
    %102 = vmatpush.msra.mxu0 0.0
    %103 = vmatpush.msra.mxu0 0.0
    %104 = vmatpush.msra.mxu0 0.0
    %105 = vmatpush.msra.mxu0 0.0
    %106 = vmatpush.msra.mxu0 %v80
    %107 = vmatpush.msra.mxu0 %v79
    %108 = vmatpush.msra.mxu0 %v78
    %109 = vmatpush.msra.mxu0 %v77
    %110 = vmatpush.msra.mxu0 %v76
    %111 = vmatpush.msra.mxu0 %v75
    %112 = vmatpush.msra.mxu0 %v74
    %113 = vmatpush.msra.mxu0 %v73
    %114 = vmatmul.f32.gmra.mxu0 %v94
    %v115 = vpop.f32.mrf.mxu0
    %v116 = vadd.f32 %v86, %v115
    %117 = vmatmul.f32.gmra.mxu0 %v96
    %v118 = vpop.f32.mrf.mxu0
    %v119 = vadd.f32 %v91, %v118
    %120 = vdwg.mxu0
    %v121 = vmax.f32 %v116, 0.0
    %v122 = vmax.f32 %v119, 0.0
    %v123 = vld [vmem:[#allocation2] sm:$0xff]
    %125 = vset.pattern.permute.xlu0 81
    %126 = vperm.xlu0 %125, %v123
    %v127 = vpop.permute.xlu0 %126
    %129 = vrot.lane.b32.xlu0 %v123, 64
    %v130 = vpop.permute.xlu0 %129
    %vm131 = vcmask 130048
    %v132 = vsel %vm131, %v130, 0
    %134 = vmatpush.msra.mxu0 0.0
    %135 = vmatpush.msra.mxu0 0.0
    %136 = vmatpush.msra.mxu0 0.0
    %137 = vmatpush.msra.mxu0 0.0
    %138 = vmatpush.msra.mxu0 0.0
    %139 = vmatpush.msra.mxu0 0.0
    %140 = vmatpush.msra.mxu0 0.0
    %141 = vmatpush.msra.mxu0 0.0
    %142 = vmatpush.msra.mxu0 0.0
    %143 = vmatpush.msra.mxu0 0.0
    %144 = vmatpush.msra.mxu0 0.0
    %145 = vmatpush.msra.mxu0 0.0
    %146 = vmatpush.msra.mxu0 0.0
    %147 = vmatpush.msra.mxu0 0.0
    %148 = vmatpush.msra.mxu0 %v122
    %149 = vmatpush.msra.mxu0 %v121
    %150 = vmatmul.f32.gmra.mxu0 %v132
    %v151 = vpop.f32.mrf.mxu0
    %v152 = vadd.f32 %v127, %v151
    %153 = vdwg.mxu0
    %v154 = vmax.f32 %v152, 0.0
    %v155 = vld [vmem:[#allocation2] sm:$0x1]
    %156 = vset.pattern.permute.xlu0 82
    %157 = vperm.xlu0 %156, %v123
    %v158 = vpop.permute.xlu0 %157
    %v160 = vmul.f32 %v154, %v158
    %v161 = vrot.slane %v160, 4
    %v162 = vadd.f32 %v160, %v161
    %v163 = vrot.slane %v162, 2
    %v164 = vadd.f32 %v162, %v163
    %v165 = vrot.slane %v164, 1
    %v166 = vadd.f32 %v164, %v165
    %168 = vset.pattern.permute.xlu0 83
    %169 = vperm.xlu0 %168, %v155
    %v170 = vpop.permute.xlu0 %169
    %v172 = vadd.f32 %v166, %v170
    %v173 = vsub.f32 0.0, %v172
    %v174 = vmul.f32 %v173, 1.442695
    %v175 = vpow.pop %v174
    %v176 = vadd.f32 %v175, 1.0
    %v177 = vrcp.pop %v176
    %v178 = vmul.f32 %v176, %v177
    %v179 = vsub.f32 1.0, %v178
    %v180 = vmul.f32 %v177, %v179
    %v181 = vadd.f32 %v177, %v180
    %vm182 = vweird.f32 %v176
    %vm183 = vweird.f32 %v177
    %vm184 = vmor %vm182, %vm183
    %v185 = vsel %vm184, %v177, %v181
    %v186 = vand.u32 2147483647, %v176
    %vm187 = vcmp.eq.f32.partialorder %v186, 8.507059e+37
    %v188 = vand.u32 %v176, 2147483648
    %v189 = vor.u32 1.1754944e-38, %v188
    %v190 = vsel %vm187, %v189, %v185
    %191 = vst [vmem:[%s2] sm:$0x1] %v190
    // Predicated region
    $region14: #{forward.1} parent=1 // pred_check
      _
    $region15: #{forward.1} parent=1 // pred_check_branch
      %193 = sbr.rel (0) target = $region17
    $region16: #{forward.1} parent=1 // pred_region
      _
    $region17: #{forward.1} parent=1 // pred_fallthru
      _
    // Predicated region
    $region18: #{forward.1} parent=1 // pred_check
      _
    $region19: #{forward.1} parent=1 // pred_check_branch
      %195 = sbr.rel (0) target = $region21
    $region20: #{forward.1} parent=1 // pred_region
      _
    $region21: #{forward.1} parent=1 // pred_fallthru
      _
    %196 = vsyncpa [#allocation3], 1

</llo_original>
